<compile_context>
chip_gen: v5e
topology: v5e:2x2
jax: 0.10.0
libtpu: 0.0.40
codegen_flags: <defaults>
</compile_context>

<pallas_src>
import math

import jax
import jax.numpy as jnp
from jax.experimental import pallas as pl
from jax.experimental.pallas import tpu as pltpu


def _select_kernel(x_ref, w0_ref, w1_ref, b_ref, o0_ref, o1_ref):
    # x_ref: (TM, C_in); w*_ref: (C_in, C_out); b_ref: (1, C_out) f32
    x = x_ref[...]
    b = b_ref[...]
    o0_ref[...] = (jnp.dot(x, w0_ref[...], preferred_element_type=jnp.float32)
                   + b).astype(o0_ref.dtype)
    o1_ref[...] = (jnp.dot(x, w1_ref[...], preferred_element_type=jnp.float32)
                   + b).astype(o1_ref.dtype)


def _choose_row_tile(M, desired):
    """Full extent if small; else the largest multiple-of-8 divisor of M that
    is <= desired (avoids an HBM pad copy of the whole input)."""
    if M <= desired:
        return M
    t = (desired // 8) * 8
    while t >= 8:
        if M % t == 0:
            return t
        t -= 8
    return desired  # no good divisor -> caller pads (rare)


def select_forward(x, weight, weight1, bias, *, lr_mul=1.0, tm=2048):
    """Forward pass of `select` (EqualLinear with two weights, no activation).

    x:       (..., C_in)
    weight:  (C_out, C_in)
    weight1: (C_out, C_in)
    bias:    (C_out,)
    returns (scale1, scale2), each (..., C_out)
    """
    *lead, in_channels = x.shape
    out_channels = weight.shape[0]
    scale = (1.0 / math.sqrt(in_channels)) * lr_mul

    # Fold scale / lr_mul into the tiny params once, outside the kernel.
    w0 = (weight * scale).T.astype(x.dtype)                 # (C_in, C_out)
    w1 = (weight1 * scale).T.astype(x.dtype)                # (C_in, C_out)
    b = (bias * lr_mul).reshape(1, out_channels).astype(jnp.float32)

    M = math.prod(lead) if lead else 1
    x_flat = x.reshape(M, in_channels)

    tm_eff = _choose_row_tile(M, tm)
    M_pad = pl.cdiv(M, tm_eff) * tm_eff
    if M_pad != M:   # only when no divisor tile exists
        x_flat = jnp.pad(x_flat, ((0, M_pad - M), (0, 0)))

    grid = (M_pad // tm_eff,)

    out0_flat, out1_flat = pl.pallas_call(
        _select_kernel,
        out_shape=(jax.ShapeDtypeStruct((M_pad, out_channels), x.dtype),
                   jax.ShapeDtypeStruct((M_pad, out_channels), x.dtype)),
        grid_spec=pltpu.PrefetchScalarGridSpec(
            num_scalar_prefetch=0,
            grid=grid,
            in_specs=[
                pl.BlockSpec((tm_eff, in_channels), lambda i: (i, 0)),
                pl.BlockSpec((in_channels, out_channels), lambda i: (0, 0)),
                pl.BlockSpec((in_channels, out_channels), lambda i: (0, 0)),
                pl.BlockSpec((1, out_channels), lambda i: (0, 0)),
            ],
            out_specs=[
                pl.BlockSpec((tm_eff, out_channels), lambda i: (i, 0)),
                pl.BlockSpec((tm_eff, out_channels), lambda i: (i, 0)),
            ],
        ),
        compiler_params=pltpu.CompilerParams(
            dimension_semantics=("parallel",)),
    )(x_flat, w0, w1, b)

    if M_pad != M:
        out0_flat = out0_flat[:M]
        out1_flat = out1_flat[:M]
    out_shape = tuple(lead) + (out_channels,)
    return out0_flat.reshape(out_shape), out1_flat.reshape(out_shape)


if __name__ == "__main__":
    key = jax.random.PRNGKey(0)
    k_x, k_w0, k_w1 = jax.random.split(key, 3)

    batch, seq, in_channels, out_channels = 2, 64, 32, 32
    lr_mul = 1.0

    x = jax.random.normal(k_x, (batch, seq, in_channels), dtype=jnp.float32)
    # EqualLinear init: weight ~ N(0,1)/lr_mul; bias filled with bias_init_val=1.
    weight = jax.random.normal(k_w0, (out_channels, in_channels),
                               dtype=jnp.float32) / lr_mul
    weight1 = jax.random.normal(k_w1, (out_channels, in_channels),
                                dtype=jnp.float32) / lr_mul
    bias = jnp.ones((out_channels,), dtype=jnp.float32)   # bias_init_val = 1

    out0, out1 = select_forward(x, weight, weight1, bias, lr_mul=lr_mul)
    jax.block_until_ready((out0, out1))

    # Plain-JAX reference (F.linear semantics on the last dim).
    s = (1.0 / math.sqrt(in_channels)) * lr_mul
    ref0 = jnp.einsum("bsi,oi->bso", x, weight * s) + (bias * lr_mul)
    ref1 = jnp.einsum("bsi,oi->bso", x, weight1 * s) + (bias * lr_mul)

    assert out0.shape == (batch, seq, out_channels)
    assert out1.shape == (batch, seq, out_channels)
    assert jnp.allclose(out0, ref0, atol=1e-4, rtol=1e-4)
    assert jnp.allclose(out1, ref1, atol=1e-4, rtol=1e-4)

    print("KERNEL_OK")
</pallas_src>

<mosaic_0001>
module attributes {stable_mosaic.version = 11 : i64} {
  func.func @_select_kernel(%arg0: i32, %arg1: memref<128x32xf32, #tpu.memory_space<vmem>>, %arg2: memref<32x32xf32, #tpu.memory_space<vmem>>, %arg3: memref<32x32xf32, #tpu.memory_space<vmem>>, %arg4: memref<1x32xf32, #tpu.memory_space<vmem>>, %arg5: memref<128x32xf32, #tpu.memory_space<vmem>>, %arg6: memref<128x32xf32, #tpu.memory_space<vmem>>) attributes {dimension_semantics = [#tpu.dimension_semantics<parallel>], iteration_bounds = array<i64: 1>, scalar_prefetch = 0 : i64, scratch_operands = 0 : i64, tpu.core_type = #tpu.core_type<tc>, window_params = [{transform_indices = @transform_0, window_bounds = array<i64: 128, 32>}, {pipeline_mode = #tpu.pipeline_mode<synchronous>, transform_indices = @transform_1, window_bounds = array<i64: 32, 32>}, {pipeline_mode = #tpu.pipeline_mode<synchronous>, transform_indices = @transform_2, window_bounds = array<i64: 32, 32>}, {pipeline_mode = #tpu.pipeline_mode<synchronous>, transform_indices = @transform_3, window_bounds = array<i64: 1, 32>}, {transform_indices = @transform_4, window_bounds = array<i64: 128, 32>}, {transform_indices = @transform_5, window_bounds = array<i64: 128, 32>}]} {
    %c0 = arith.constant 0 : index
    %c0_0 = arith.constant 0 : index
    %0 = vector.load %arg1[%c0, %c0_0] : memref<128x32xf32, #tpu.memory_space<vmem>>, vector<128x32xf32>
    %c0_1 = arith.constant 0 : index
    %c0_2 = arith.constant 0 : index
    %1 = vector.load %arg4[%c0_1, %c0_2] : memref<1x32xf32, #tpu.memory_space<vmem>>, vector<1x32xf32>
    %c0_3 = arith.constant 0 : index
    %c0_4 = arith.constant 0 : index
    %2 = vector.load %arg2[%c0_3, %c0_4] : memref<32x32xf32, #tpu.memory_space<vmem>>, vector<32x32xf32>
    %cst = arith.constant dense<0.000000e+00> : vector<128x32xf32>
    %3 = tpu.matmul %0, %2, %cst {dimension_numbers = #tpu.dot_dimension_numbers<[1], [0], [0], [1], [0, 0, 1, 1], [], []>} : vector<128x32xf32>, vector<32x32xf32>, vector<128x32xf32> -> vector<128x32xf32>
    %4 = vector.broadcast %1 : vector<1x32xf32> to vector<128x32xf32>
    %5 = arith.addf %3, %4 : vector<128x32xf32>
    %c0_5 = arith.constant 0 : index
    %c0_6 = arith.constant 0 : index
    %6 = vector.load %arg5[%c0_5, %c0_6] : memref<128x32xf32, #tpu.memory_space<vmem>>, vector<128x32xf32>
    tpu.vector_store %arg5[%c0_5, %c0_6], %5 {strides = array<i32>} : memref<128x32xf32, #tpu.memory_space<vmem>>, vector<128x32xf32>,
    %c0_7 = arith.constant 0 : index
    %c0_8 = arith.constant 0 : index
    %7 = vector.load %arg3[%c0_7, %c0_8] : memref<32x32xf32, #tpu.memory_space<vmem>>, vector<32x32xf32>
    %cst_9 = arith.constant dense<0.000000e+00> : vector<128x32xf32>
    %8 = tpu.matmul %0, %7, %cst_9 {dimension_numbers = #tpu.dot_dimension_numbers<[1], [0], [0], [1], [0, 0, 1, 1], [], []>} : vector<128x32xf32>, vector<32x32xf32>, vector<128x32xf32> -> vector<128x32xf32>
    %9 = vector.broadcast %1 : vector<1x32xf32> to vector<128x32xf32>
    %10 = arith.addf %8, %9 : vector<128x32xf32>
    %c0_10 = arith.constant 0 : index
    %c0_11 = arith.constant 0 : index
    %11 = vector.load %arg6[%c0_10, %c0_11] : memref<128x32xf32, #tpu.memory_space<vmem>>, vector<128x32xf32>
    tpu.vector_store %arg6[%c0_10, %c0_11], %10 {strides = array<i32>} : memref<128x32xf32, #tpu.memory_space<vmem>>, vector<128x32xf32>,
    return
  }
  func.func @transform_0(%arg0: i32) -> (i32, i32) {
    %c0_i32 = arith.constant 0 : i32
    %c0_i32_0 = arith.constant 0 : i32
    return %arg0, %c0_i32 : i32, i32
  }
  func.func @transform_1(%arg0: i32) -> (i32, i32) {
    %c0_i32 = arith.constant 0 : i32
    %c0_i32_0 = arith.constant 0 : i32
    %c0_i32_1 = arith.constant 0 : i32
    return %c0_i32, %c0_i32_0 : i32, i32
  }
  func.func @transform_2(%arg0: i32) -> (i32, i32) {
    %c0_i32 = arith.constant 0 : i32
    %c0_i32_0 = arith.constant 0 : i32
    %c0_i32_1 = arith.constant 0 : i32
    return %c0_i32, %c0_i32_0 : i32, i32
  }
  func.func @transform_3(%arg0: i32) -> (i32, i32) {
    %c0_i32 = arith.constant 0 : i32
    %c0_i32_0 = arith.constant 0 : i32
    %c0_i32_1 = arith.constant 0 : i32
    return %c0_i32, %c0_i32_0 : i32, i32
  }
  func.func @transform_4(%arg0: i32) -> (i32, i32) {
    %c0_i32 = arith.constant 0 : i32
    %c0_i32_0 = arith.constant 0 : i32
    return %arg0, %c0_i32 : i32, i32
  }
  func.func @transform_5(%arg0: i32) -> (i32, i32) {
    %c0_i32 = arith.constant 0 : i32
    %c0_i32_0 = arith.constant 0 : i32
    return %arg0, %c0_i32 : i32, i32
  }
}

</mosaic_0001>

<llo_original>
// kernel: tpu_custom_call.1
$region0: #{tpu_custom_call.1}
  #allocation0 [shape = 'u32[]', space=smem, size = 0x4, offset = 0x4, fixed_abs, tag = 'smem constant byte address 0x4 - core index']
  #allocation1 [shape = 'u32[72,128]{1,0:T(1,128)}', space=vmem, size = 0x9000, scoped, tag = 'internal scratch']
  %s0 = inlined_call_operand.vmem [shape: f32[128,32], index: 0, kind: input, shape index: {}]
  %s1 = inlined_call_operand.vmem [shape: f32[32,32], index: 1, kind: input, shape index: {}]
  %s2 = inlined_call_operand.vmem [shape: f32[32,32], index: 2, kind: input, shape index: {}]
  %s3 = inlined_call_operand.vmem [shape: f32[1,32], index: 3, kind: input, shape index: {}]
  %s4 = inlined_call_operand.vmem [shape: f32[128,32], index: 4, kind: output, shape index: {0}]
  %s5 = inlined_call_operand.vmem [shape: f32[128,32], index: 5, kind: output, shape index: {1}]
  %6 = xla_tuple %s4, %s5
  %s7 = sld [smem:[#allocation0]]
  $region34: #{tpu_custom_call.1} parent=0
    _
  %s9 = ssub.s32 1, %s7
  %s10 = scalar_select 0, %s9, %s7
  // Predicated region
  $region2: #{tpu_custom_call.1} parent=0 // pred_check
    _
  $region3: #{tpu_custom_call.1} parent=0 // pred_check_branch
    %12 = sbr.rel (0) target = $region5
  $region4: #{tpu_custom_call.1} parent=0 // pred_region
    _
  $region5: #{tpu_custom_call.1} parent=0 // pred_fallthru
    _
  // Predicated region
  $region6: #{tpu_custom_call.1} parent=0 // pred_check
    _
  $region7: #{tpu_custom_call.1} parent=0 // pred_check_branch
    %14 = sbr.rel (0) target = $region9
  $region8: #{tpu_custom_call.1} parent=0 // pred_region
    _
  $region9: #{tpu_custom_call.1} parent=0 // pred_fallthru
    _
  // Predicated region
  $region10: #{tpu_custom_call.1} parent=0 // pred_check
    _
  $region11: #{tpu_custom_call.1} parent=0 // pred_check_branch
    %16 = sbr.rel (0) target = $region13
  $region12: #{tpu_custom_call.1} parent=0 // pred_region
    _
  $region13: #{tpu_custom_call.1} parent=0 // pred_fallthru
    _
  // Predicated region
  $region14: #{tpu_custom_call.1} parent=0 // pred_check
    _
  $region15: #{tpu_custom_call.1} parent=0 // pred_check_branch
    %18 = sbr.rel (0) target = $region17
  $region16: #{tpu_custom_call.1} parent=0 // pred_region
    _
  $region17: #{tpu_custom_call.1} parent=0 // pred_fallthru
    _
  %v19 = vld [vmem:[%s0] sm:$0xff]
  %v20 = vld [vmem:[%s0 + $0x8] sm:$0xff]
  %v21 = vld [vmem:[%s0 + $0x10] sm:$0xff]
  %v22 = vld [vmem:[%s0 + $0x18] sm:$0xff]
  %v23 = vld [vmem:[%s0 + $0x20] sm:$0xff]
  %v24 = vld [vmem:[%s0 + $0x28] sm:$0xff]
  %v25 = vld [vmem:[%s0 + $0x30] sm:$0xff]
  %v26 = vld [vmem:[%s0 + $0x38] sm:$0xff]
  %v27 = vld [vmem:[%s0 + $0x40] sm:$0xff]
  %v28 = vld [vmem:[%s0 + $0x48] sm:$0xff]
  %v29 = vld [vmem:[%s0 + $0x50] sm:$0xff]
  %v30 = vld [vmem:[%s0 + $0x58] sm:$0xff]
  %v31 = vld [vmem:[%s0 + $0x60] sm:$0xff]
  %v32 = vld [vmem:[%s0 + $0x68] sm:$0xff]
  %v33 = vld [vmem:[%s0 + $0x70] sm:$0xff]
  %v34 = vld [vmem:[%s0 + $0x78] sm:$0xff]
  %v35 = vld [vmem:[%s3] sm:$0x1]
  %v36 = vld [vmem:[%s1] sm:$0xff]
  %v37 = vld [vmem:[%s1 + $0x8] sm:$0xff]
  %v38 = vld [vmem:[%s1 + $0x10] sm:$0xff]
  %v39 = vld [vmem:[%s1 + $0x18] sm:$0xff]
  %v41 = vperm.slane %v35, 0
  %vm43 = vcmask 261120
  %v45 = vsel %vm43, %v19, 0
  %v48 = vsel %vm43, %v20, 0
  %v51 = vsel %vm43, %v21, 0
  %v54 = vsel %vm43, %v22, 0
  %v57 = vsel %vm43, %v23, 0
  %v60 = vsel %vm43, %v24, 0
  %v63 = vsel %vm43, %v25, 0
  %v66 = vsel %vm43, %v26, 0
  %v69 = vsel %vm43, %v27, 0
  %v72 = vsel %vm43, %v28, 0
  %v75 = vsel %vm43, %v29, 0
  %v78 = vsel %vm43, %v30, 0
  %v81 = vsel %vm43, %v31, 0
  %v84 = vsel %vm43, %v32, 0
  %v87 = vsel %vm43, %v33, 0
  %v90 = vsel %vm43, %v34, 0
  %92 = vmatpush.msra.mxu0 0.0
  %93 = vmatpush.msra.mxu0 0.0
  %94 = vmatpush.msra.mxu0 0.0
  %95 = vmatpush.msra.mxu0 0.0
  %96 = vmatpush.msra.mxu0 0.0
  %97 = vmatpush.msra.mxu0 0.0
  %98 = vmatpush.msra.mxu0 0.0
  %99 = vmatpush.msra.mxu0 0.0
  %100 = vmatpush.msra.mxu0 0.0
  %101 = vmatpush.msra.mxu0 0.0
  %102 = vmatpush.msra.mxu0 0.0
  %103 = vmatpush.msra.mxu0 0.0
  %104 = vmatpush.msra.mxu0 %v39
  %105 = vmatpush.msra.mxu0 %v38
  %106 = vmatpush.msra.mxu0 %v37
  %107 = vmatpush.msra.mxu0 %v36
  %108 = vmatmul.f32.gmra.mxu0 %v45
  %v109 = vpop.f32.mrf.mxu0
  %v110 = vadd.f32 %v41, %v109
  %111 = vmatmul.f32.gmra.mxu0 %v48
  %v112 = vpop.f32.mrf.mxu0
  %v113 = vadd.f32 %v41, %v112
  %114 = vmatmul.f32.gmra.mxu0 %v51
  %v115 = vpop.f32.mrf.mxu0
  %v116 = vadd.f32 %v41, %v115
  %117 = vmatmul.f32.gmra.mxu0 %v54
  %v118 = vpop.f32.mrf.mxu0
  %v119 = vadd.f32 %v41, %v118
  %120 = vmatmul.f32.gmra.mxu0 %v57
  %v121 = vpop.f32.mrf.mxu0
  %v122 = vadd.f32 %v41, %v121
  %123 = vmatmul.f32.gmra.mxu0 %v60
  %v124 = vpop.f32.mrf.mxu0
  %v125 = vadd.f32 %v41, %v124
  %126 = vmatmul.f32.gmra.mxu0 %v63
  %v127 = vpop.f32.mrf.mxu0
  %v128 = vadd.f32 %v41, %v127
  %129 = vmatmul.f32.gmra.mxu0 %v66
  %v130 = vpop.f32.mrf.mxu0
  %v131 = vadd.f32 %v41, %v130
  %132 = vmatmul.f32.gmra.mxu0 %v69
  %v133 = vpop.f32.mrf.mxu0
  %v134 = vadd.f32 %v41, %v133
  %135 = vmatmul.f32.gmra.mxu0 %v72
  %v136 = vpop.f32.mrf.mxu0
  %v137 = vadd.f32 %v41, %v136
  %138 = vmatmul.f32.gmra.mxu0 %v75
  %v139 = vpop.f32.mrf.mxu0
  %v140 = vadd.f32 %v41, %v139
  %141 = vmatmul.f32.gmra.mxu0 %v78
  %v142 = vpop.f32.mrf.mxu0
  %v143 = vadd.f32 %v41, %v142
  %144 = vmatmul.f32.gmra.mxu0 %v81
  %v145 = vpop.f32.mrf.mxu0
  %v146 = vadd.f32 %v41, %v145
  %147 = vmatmul.f32.gmra.mxu0 %v84
  %v148 = vpop.f32.mrf.mxu0
  %v149 = vadd.f32 %v41, %v148
  %150 = vmatmul.f32.gmra.mxu0 %v87
  %v151 = vpop.f32.mrf.mxu0
  %v152 = vadd.f32 %v41, %v151
  %153 = vmatmul.f32.gmra.mxu0 %v90
  %v154 = vpop.f32.mrf.mxu0
  %v155 = vadd.f32 %v41, %v154
  %156 = vdwg.mxu0
  %157 = vst.msk [vmem:[%s4] sm:$0xff] %vm43, %v110
  %158 = vst.msk [vmem:[%s4 + $0x8] sm:$0xff] %vm43, %v113
  %159 = vst.msk [vmem:[%s4 + $0x10] sm:$0xff] %vm43, %v116
  %160 = vst.msk [vmem:[%s4 + $0x18] sm:$0xff] %vm43, %v119
  %161 = vst.msk [vmem:[%s4 + $0x20] sm:$0xff] %vm43, %v122
  %162 = vst.msk [vmem:[%s4 + $0x28] sm:$0xff] %vm43, %v125
  %163 = vst.msk [vmem:[%s4 + $0x30] sm:$0xff] %vm43, %v128
  %164 = vst.msk [vmem:[%s4 + $0x38] sm:$0xff] %vm43, %v131
  %165 = vst.msk [vmem:[%s4 + $0x40] sm:$0xff] %vm43, %v134
  %166 = vst.msk [vmem:[%s4 + $0x48] sm:$0xff] %vm43, %v137
  %167 = vst.msk [vmem:[%s4 + $0x50] sm:$0xff] %vm43, %v140
  %168 = vst.msk [vmem:[%s4 + $0x58] sm:$0xff] %vm43, %v143
  %169 = vst.msk [vmem:[%s4 + $0x60] sm:$0xff] %vm43, %v146
  %170 = vst.msk [vmem:[%s4 + $0x68] sm:$0xff] %vm43, %v149
  %171 = vst.msk [vmem:[%s4 + $0x70] sm:$0xff] %vm43, %v152
  %172 = vst.msk [vmem:[%s4 + $0x78] sm:$0xff] %vm43, %v155
  %v173 = vld [vmem:[%s2] sm:$0xff]
  %v174 = vld [vmem:[%s2 + $0x8] sm:$0xff]
  %v175 = vld [vmem:[%s2 + $0x10] sm:$0xff]
  %v176 = vld [vmem:[%s2 + $0x18] sm:$0xff]
  %177 = vmatpush.msra.mxu0 0.0
  %178 = vmatpush.msra.mxu0 0.0
  %179 = vmatpush.msra.mxu0 0.0
  %180 = vmatpush.msra.mxu0 0.0
  %181 = vmatpush.msra.mxu0 0.0
  %182 = vmatpush.msra.mxu0 0.0
  %183 = vmatpush.msra.mxu0 0.0
  %184 = vmatpush.msra.mxu0 0.0
  %185 = vmatpush.msra.mxu0 0.0
  %186 = vmatpush.msra.mxu0 0.0
  %187 = vmatpush.msra.mxu0 0.0
  %188 = vmatpush.msra.mxu0 0.0
  %189 = vmatpush.msra.mxu0 %v176
  %190 = vmatpush.msra.mxu0 %v175
  %191 = vmatpush.msra.mxu0 %v174
  %192 = vmatpush.msra.mxu0 %v173
  %193 = vmatmul.f32.gmra.mxu0 %v45
  %v194 = vpop.f32.mrf.mxu0
  %v195 = vadd.f32 %v41, %v194
  %196 = vmatmul.f32.gmra.mxu0 %v48
  %v197 = vpop.f32.mrf.mxu0
  %v198 = vadd.f32 %v41, %v197
  %199 = vmatmul.f32.gmra.mxu0 %v51
  %v200 = vpop.f32.mrf.mxu0
  %v201 = vadd.f32 %v41, %v200
  %202 = vmatmul.f32.gmra.mxu0 %v54
  %v203 = vpop.f32.mrf.mxu0
  %v204 = vadd.f32 %v41, %v203
  %205 = vmatmul.f32.gmra.mxu0 %v57
  %v206 = vpop.f32.mrf.mxu0
  %v207 = vadd.f32 %v41, %v206
  %208 = vmatmul.f32.gmra.mxu0 %v60
  %v209 = vpop.f32.mrf.mxu0
  %v210 = vadd.f32 %v41, %v209
  %211 = vmatmul.f32.gmra.mxu0 %v63
  %v212 = vpop.f32.mrf.mxu0
  %v213 = vadd.f32 %v41, %v212
  %214 = vmatmul.f32.gmra.mxu0 %v66
  %v215 = vpop.f32.mrf.mxu0
  %v216 = vadd.f32 %v41, %v215
  %217 = vmatmul.f32.gmra.mxu0 %v69
  %v218 = vpop.f32.mrf.mxu0
  %v219 = vadd.f32 %v41, %v218
  %220 = vmatmul.f32.gmra.mxu0 %v72
  %v221 = vpop.f32.mrf.mxu0
  %v222 = vadd.f32 %v41, %v221
  %223 = vmatmul.f32.gmra.mxu0 %v75
  %v224 = vpop.f32.mrf.mxu0
  %v225 = vadd.f32 %v41, %v224
  %226 = vmatmul.f32.gmra.mxu0 %v78
  %v227 = vpop.f32.mrf.mxu0
  %v228 = vadd.f32 %v41, %v227
  %229 = vmatmul.f32.gmra.mxu0 %v81
  %v230 = vpop.f32.mrf.mxu0
  %v231 = vadd.f32 %v41, %v230
  %232 = vmatmul.f32.gmra.mxu0 %v84
  %v233 = vpop.f32.mrf.mxu0
  %v234 = vadd.f32 %v41, %v233
  %235 = vmatmul.f32.gmra.mxu0 %v87
  %v236 = vpop.f32.mrf.mxu0
  %v237 = vadd.f32 %v41, %v236
  %238 = vmatmul.f32.gmra.mxu0 %v90
  %v239 = vpop.f32.mrf.mxu0
  %v240 = vadd.f32 %v41, %v239
  %241 = vdwg.mxu0
  %242 = vst.msk [vmem:[%s5] sm:$0xff] %vm43, %v195
  %243 = vst.msk [vmem:[%s5 + $0x8] sm:$0xff] %vm43, %v198
  %244 = vst.msk [vmem:[%s5 + $0x10] sm:$0xff] %vm43, %v201
  %245 = vst.msk [vmem:[%s5 + $0x18] sm:$0xff] %vm43, %v204
  %246 = vst.msk [vmem:[%s5 + $0x20] sm:$0xff] %vm43, %v207
  %247 = vst.msk [vmem:[%s5 + $0x28] sm:$0xff] %vm43, %v210
  %248 = vst.msk [vmem:[%s5 + $0x30] sm:$0xff] %vm43, %v213
  %249 = vst.msk [vmem:[%s5 + $0x38] sm:$0xff] %vm43, %v216
  %250 = vst.msk [vmem:[%s5 + $0x40] sm:$0xff] %vm43, %v219
  %251 = vst.msk [vmem:[%s5 + $0x48] sm:$0xff] %vm43, %v222
  %252 = vst.msk [vmem:[%s5 + $0x50] sm:$0xff] %vm43, %v225
  %253 = vst.msk [vmem:[%s5 + $0x58] sm:$0xff] %vm43, %v228
  %254 = vst.msk [vmem:[%s5 + $0x60] sm:$0xff] %vm43, %v231
  %255 = vst.msk [vmem:[%s5 + $0x68] sm:$0xff] %vm43, %v234
  %256 = vst.msk [vmem:[%s5 + $0x70] sm:$0xff] %vm43, %v237
  %257 = vst.msk [vmem:[%s5 + $0x78] sm:$0xff] %vm43, %v240
  // Predicated region
  $region18: #{tpu_custom_call.1} parent=0 // pred_check
    _
  $region19: #{tpu_custom_call.1} parent=0 // pred_check_branch
    %259 = sbr.rel (0) target = $region21
  $region20: #{tpu_custom_call.1} parent=0 // pred_region
    _
  $region21: #{tpu_custom_call.1} parent=0 // pred_fallthru
    _
  // Predicated region
  $region22: #{tpu_custom_call.1} parent=0 // pred_check
    _
  $region23: #{tpu_custom_call.1} parent=0 // pred_check_branch
    %261 = sbr.rel (0) target = $region25
  $region24: #{tpu_custom_call.1} parent=0 // pred_region
    _
  $region25: #{tpu_custom_call.1} parent=0 // pred_fallthru
    _
  // Predicated region
  $region26: #{tpu_custom_call.1} parent=0 // pred_check
    _
  $region27: #{tpu_custom_call.1} parent=0 // pred_check_branch
    %263 = sbr.rel (0) target = $region29
  $region28: #{tpu_custom_call.1} parent=0 // pred_region
    _
  $region29: #{tpu_custom_call.1} parent=0 // pred_fallthru
    _
  // Predicated region
  $region30: #{tpu_custom_call.1} parent=0 // pred_check
    _
  $region31: #{tpu_custom_call.1} parent=0 // pred_check_branch
    %265 = sbr.rel (0) target = $region33
  $region32: #{tpu_custom_call.1} parent=0 // pred_region
    _
  $region33: #{tpu_custom_call.1} parent=0 // pred_fallthru
    _

</llo_original>
